<compile_context>
chip_gen: v6e
topology: v6e:2x2x1
jax: 0.10.0
libtpu: 0.0.40
codegen_flags: <defaults>
</compile_context>

<pallas_src>
import jax
import jax.numpy as jnp
from jax.experimental import pallas as pl
from jax.experimental.pallas import tpu as pltpu

HIDDEN = 128
MAX_BATCH_TILE = 512          # biggest batch tile (amortizes ~0.35 us/step overhead)


def _round_up(n, m):
    return ((n + m - 1) // m) * m


def _pick_block_rows(b):
    """Largest batch tile (multiple of 8 sublanes) up to MAX_BATCH_TILE rows."""
    return min(_round_up(b, 8), MAX_BATCH_TILE)


def dueling_dqn_kernel(
    x_ref,                               # (tb, in) f32
    w1_ref, b1_ref, w2_ref, b2_ref,      # trunk: w1 f32, w2 bf16, biases f32
    wh_ref, bh_ref,                      # fused head first layer (128, 256) bf16 / (1, 256) f32
    wv2t_ref, bv2_ref,                   # value output row (1, 128) f32 + bias (1, 1)
    wa2_ref, ba2_ref,                    # advantage output (128, out) bf16 + bias (1, out)
    v_ref,                               # (tb, 1)   f32 out
    a_ref,                               # (tb, out) f32 out
):
    bf16 = jnp.bfloat16

    # ---- trunk layer 1: full f32 operands (fidelity for raw observations; K is tiny)
    h = jnp.dot(x_ref[...], w1_ref[...], preferred_element_type=jnp.float32) + b1_ref[...]
    h = jnp.maximum(h, 0.0)
    # ---- trunk layer 2: bf16 operands on the MXU, f32 accumulate + epilogue
    h = jnp.dot(h.astype(bf16), w2_ref[...], preferred_element_type=jnp.float32) + b2_ref[...]
    h = jnp.maximum(h, 0.0)

    # ---- fused value/advantage first layers: single N=256 matmul
    heads = jnp.dot(h.astype(bf16), wh_ref[...],
                    preferred_element_type=jnp.float32) + bh_ref[...]
    heads = jnp.maximum(heads, 0.0)
    hv = heads[:, :HIDDEN]    # (tb, 128) value-head hidden   (clean 128-lane split)
    ha = heads[:, HIDDEN:]    # (tb, 128) advantage-head hidden

    # ---- value projection (128 -> 1): VPU multiply + XLU lane reduce, no N=1 MXU matmul
    v_ref[...] = jnp.sum(hv * wv2t_ref[...], axis=-1, keepdims=True) + bv2_ref[...]

    # ---- advantage projection (128 -> out) on the MXU
    a_ref[...] = jnp.dot(ha.astype(bf16), wa2_ref[...],
                         preferred_element_type=jnp.float32) + ba2_ref[...]


def dueling_dqn_forward(x, kp):
    """x: (B, input_size) float32; kp: kernel-layout params from prepare_params()."""
    B, in_size = x.shape
    out_size = kp["wa2"].shape[1]

    tb = _pick_block_rows(B)
    pB = _round_up(B, tb)
    if pB != B:
        x = jnp.pad(x, ((0, pB - B), (0, 0)))

    args = (
        x,
        kp["w1"], kp["b1"], kp["w2"], kp["b2"],
        kp["w_heads"], kp["b_heads"],
        kp["wv2_t"], kp["bv2"],
        kp["wa2"], kp["ba2"],
    )

    row = lambda i: (i, 0)      # batch-tiled arrays
    const = lambda i: (0, 0)    # VMEM-resident weights / biases

    in_specs = [pl.BlockSpec((tb, in_size), row)] + [
        pl.BlockSpec(a.shape, const) for a in args[1:]
    ]
    out_specs = (
        pl.BlockSpec((tb, 1), row),
        pl.BlockSpec((tb, out_size), row),
    )
    out_shape = (
        jax.ShapeDtypeStruct((pB, 1), jnp.float32),
        jax.ShapeDtypeStruct((pB, out_size), jnp.float32),
    )

    weight_bytes = sum(int(a.size) * a.dtype.itemsize for a in args[1:])

    flops = 2 * pB * (in_size * HIDDEN          # trunk layer 1
                      + HIDDEN * HIDDEN         # trunk layer 2
                      + HIDDEN * 2 * HIDDEN     # fused head first layer (N=256)
                      + HIDDEN * out_size       # advantage output
                      + HIDDEN)                 # value dot-product (VPU)
    bytes_accessed = (pB * in_size * 4           # x streamed once
                      + weight_bytes             # weights resident, read once
                      + pB * (1 + out_size) * 4) # v, a outputs

    # Scoped-VMEM budget from actual buffer sizes (v5e default is only 16 MiB).
    per_row_bytes = (2 * in_size * 4              # x, double-buffered
                     + HIDDEN * (4 + 2)           # h f32 + bf16 operand copy
                     + 2 * HIDDEN * (4 + 2)       # heads f32 + bf16 operand copies
                     + HIDDEN * 4                 # value-head multiply temp
                     + 2 * (1 + out_size) * 4)    # v, a outputs, double-buffered
    vmem_bytes = 2 * weight_bytes + tb * per_row_bytes + (4 << 20)   # + headroom
    vmem_bytes = int(min(max(vmem_bytes, 16 << 20), 64 << 20))

    v, a = pl.pallas_call(
        dueling_dqn_kernel,
        grid=(pB // tb,),
        in_specs=in_specs,
        out_specs=out_specs,
        out_shape=out_shape,
        compiler_params=pltpu.CompilerParams(
            dimension_semantics=("parallel",),    # batch blocks independent -> v7x dual-TC
            vmem_limit_bytes=vmem_bytes),
        cost_estimate=pl.CostEstimate(
            flops=flops, transcendentals=0, bytes_accessed=bytes_accessed),
    )(*args)

    v = v[:B]
    a = a[:B]

    # Finalize (pass 2 of the two-pass split): the module's GLOBAL
    # `advantages.mean()` couples batch rows, so it lives here as a tiny fused
    # XLA reduce + elementwise epilogue rather than inside the parallel grid.
    return v + (a - jnp.mean(a))


def init_params(key, input_size, output_size):
    """Deterministic synthetic init (PyTorch-style uniform fan-in scaling), f32."""
    def linear(k, fan_in, fan_out):
        kw, kb = jax.random.split(k)
        bound = 1.0 / jnp.sqrt(fan_in)
        w = jax.random.uniform(kw, (fan_in, fan_out), jnp.float32, -bound, bound)
        b = jax.random.uniform(kb, (1, fan_out), jnp.float32, -bound, bound)
        return w, b

    keys = jax.random.split(key, 6)
    w1, b1 = linear(keys[0], input_size, HIDDEN)
    w2, b2 = linear(keys[1], HIDDEN, HIDDEN)
    wv1, bv1 = linear(keys[2], HIDDEN, HIDDEN)
    wv2, bv2 = linear(keys[3], HIDDEN, 1)
    wa1, ba1 = linear(keys[4], HIDDEN, HIDDEN)
    wa2, ba2 = linear(keys[5], HIDDEN, output_size)
    return dict(w1=w1, b1=b1, w2=w2, b2=b2,
                wv1=wv1, bv1=bv1, wv2=wv2, bv2=bv2,
                wa1=wa1, ba1=ba1, wa2=wa2, ba2=ba2)


def prepare_params(p):
    """One-time conversion of PyTorch-layout f32 params into kernel layout:
       - value/advantage first-layer weights & biases concatenated (N=256 fused dot),
       - w2 / w_heads / wa2 cast to bf16 (MXU operands); w1 and all biases stay f32
         (the first matmul keeps f32 operands for observation fidelity),
       - the 128->1 value weight kept f32, pre-transposed to a (1, 128) row for the
         in-kernel VPU multiply + lane reduce."""
    bf16 = jnp.bfloat16
    return dict(
        w1=p["w1"], b1=p["b1"],
        w2=p["w2"].astype(bf16), b2=p["b2"],
        w_heads=jnp.concatenate([p["wv1"], p["wa1"]], axis=1).astype(bf16),  # (128, 256)
        b_heads=jnp.concatenate([p["bv1"], p["ba1"]], axis=1),               # (1, 256)
        wv2_t=p["wv2"].T,                                                    # (1, 128) f32
        bv2=p["bv2"],                                                        # (1, 1)
        wa2=p["wa2"].astype(bf16), ba2=p["ba2"],
    )


def reference_forward_f32(x, p):
    """Pure-JAX full-f32 reference mirroring the PyTorch module exactly."""
    hi = jax.lax.Precision.HIGHEST
    h = jnp.maximum(jnp.dot(x, p["w1"], precision=hi) + p["b1"], 0.0)
    h = jnp.maximum(jnp.dot(h, p["w2"], precision=hi) + p["b2"], 0.0)
    v = jnp.dot(jnp.maximum(jnp.dot(h, p["wv1"], precision=hi) + p["bv1"], 0.0),
                p["wv2"], precision=hi) + p["bv2"]
    a = jnp.dot(jnp.maximum(jnp.dot(h, p["wa1"], precision=hi) + p["ba1"], 0.0),
                p["wa2"], precision=hi) + p["ba2"]
    return v + (a - jnp.mean(a))


def reference_forward_kernel_recipe(x, p):
    """Pure-JAX reference using the kernel's exact arithmetic recipe:
       f32 first matmul, bf16-operand / f32-accumulate for the rest,
       VPU-style value reduce."""
    bf16 = jnp.bfloat16

    def bdot(a, b):
        return jnp.dot(a.astype(bf16), b.astype(bf16), preferred_element_type=jnp.float32)

    h = jnp.maximum(
        jnp.dot(x, p["w1"], preferred_element_type=jnp.float32,
                precision=jax.lax.Precision.HIGHEST) + p["b1"], 0.0)
    h = jnp.maximum(bdot(h, p["w2"]) + p["b2"], 0.0)
    hv = jnp.maximum(bdot(h, p["wv1"]) + p["bv1"], 0.0)
    ha = jnp.maximum(bdot(h, p["wa1"]) + p["ba1"], 0.0)
    v = jnp.sum(hv * p["wv2"].T, axis=-1, keepdims=True) + p["bv2"]
    a = bdot(ha, p["wa2"]) + p["ba2"]
    return v + (a - jnp.mean(a))


if __name__ == "__main__":
    key = jax.random.PRNGKey(0)
    k_params, k_x = jax.random.split(key)

    batch = 8
    input_size = 16
    output_size = 8

    params = init_params(k_params, input_size, output_size)
    kparams = prepare_params(params)          # done once, reused every call
    x = jax.random.normal(k_x, (batch, input_size), jnp.float32)

    qvals = jax.block_until_ready(dueling_dqn_forward(x, kparams))
    assert qvals.shape == (batch, output_size)

    # Exact-logic check against a reference using the same mixed-precision recipe.
    ref_recipe = reference_forward_kernel_recipe(x, params)
    assert jnp.allclose(qvals, ref_recipe, atol=2e-3, rtol=2e-3), "mismatch vs recipe reference"

    # Fidelity check against the full-f32 PyTorch-equivalent reference
    # (looser tolerance: later matmuls use bf16 operands with f32 accumulation).
    ref_f32 = reference_forward_f32(x, params)
    assert jnp.allclose(qvals, ref_f32, atol=3e-2, rtol=3e-2), "mismatch vs f32 reference"

    print("KERNEL_OK")
</pallas_src>

<mosaic_0001>
module attributes {stable_mosaic.version = 11 : i64} {
  func.func @dueling_dqn_kernel(%arg0: i32, %arg1: memref<8x16xf32, #tpu.memory_space<vmem>>, %arg2: memref<16x128xf32, #tpu.memory_space<vmem>>, %arg3: memref<1x128xf32, #tpu.memory_space<vmem>>, %arg4: memref<128x128xbf16, #tpu.memory_space<vmem>>, %arg5: memref<1x128xf32, #tpu.memory_space<vmem>>, %arg6: memref<128x256xbf16, #tpu.memory_space<vmem>>, %arg7: memref<1x256xf32, #tpu.memory_space<vmem>>, %arg8: memref<1x128xf32, #tpu.memory_space<vmem>>, %arg9: memref<1x1xf32, #tpu.memory_space<vmem>>, %arg10: memref<128x8xbf16, #tpu.memory_space<vmem>>, %arg11: memref<1x8xf32, #tpu.memory_space<vmem>>, %arg12: memref<8x1xf32, #tpu.memory_space<vmem>>, %arg13: memref<8x8xf32, #tpu.memory_space<vmem>>) attributes {dimension_semantics = [#tpu.dimension_semantics<parallel>], iteration_bounds = array<i64: 1>, scalar_prefetch = 0 : i64, scratch_operands = 0 : i64, tpu.core_type = #tpu.core_type<tc>, window_params = [{transform_indices = @transform_0, window_bounds = array<i64: 8, 16>}, {pipeline_mode = #tpu.pipeline_mode<synchronous>, transform_indices = @transform_1, window_bounds = array<i64: 16, 128>}, {pipeline_mode = #tpu.pipeline_mode<synchronous>, transform_indices = @transform_2, window_bounds = array<i64: 1, 128>}, {pipeline_mode = #tpu.pipeline_mode<synchronous>, transform_indices = @transform_3, window_bounds = array<i64: 128, 128>}, {pipeline_mode = #tpu.pipeline_mode<synchronous>, transform_indices = @transform_4, window_bounds = array<i64: 1, 128>}, {pipeline_mode = #tpu.pipeline_mode<synchronous>, transform_indices = @transform_5, window_bounds = array<i64: 128, 256>}, {pipeline_mode = #tpu.pipeline_mode<synchronous>, transform_indices = @transform_6, window_bounds = array<i64: 1, 256>}, {pipeline_mode = #tpu.pipeline_mode<synchronous>, transform_indices = @transform_7, window_bounds = array<i64: 1, 128>}, {pipeline_mode = #tpu.pipeline_mode<synchronous>, transform_indices = @transform_8, window_bounds = array<i64: 1, 1>}, {pipeline_mode = #tpu.pipeline_mode<synchronous>, transform_indices = @transform_9, window_bounds = array<i64: 128, 8>}, {pipeline_mode = #tpu.pipeline_mode<synchronous>, transform_indices = @transform_10, window_bounds = array<i64: 1, 8>}, {transform_indices = @transform_11, window_bounds = array<i64: 8, 1>}, {transform_indices = @transform_12, window_bounds = array<i64: 8, 8>}]} {
    %c0 = arith.constant 0 : index
    %c0_0 = arith.constant 0 : index
    %0 = vector.load %arg1[%c0, %c0_0] : memref<8x16xf32, #tpu.memory_space<vmem>>, vector<8x16xf32>
    %c0_1 = arith.constant 0 : index
    %c0_2 = arith.constant 0 : index
    %1 = vector.load %arg2[%c0_1, %c0_2] : memref<16x128xf32, #tpu.memory_space<vmem>>, vector<16x128xf32>
    %cst = arith.constant dense<0.000000e+00> : vector<8x128xf32>
    %2 = tpu.matmul %0, %1, %cst {dimension_numbers = #tpu.dot_dimension_numbers<[1], [0], [0], [1], [0, 0, 1, 1], [], []>} : vector<8x16xf32>, vector<16x128xf32>, vector<8x128xf32> -> vector<8x128xf32>
    %c0_3 = arith.constant 0 : index
    %c0_4 = arith.constant 0 : index
    %3 = vector.load %arg3[%c0_3, %c0_4] : memref<1x128xf32, #tpu.memory_space<vmem>>, vector<1x128xf32>
    %4 = vector.broadcast %3 : vector<1x128xf32> to vector<8x128xf32>
    %5 = arith.addf %2, %4 : vector<8x128xf32>
    %cst_5 = arith.constant 0.000000e+00 : f32
    %6 = vector.broadcast %cst_5 : f32 to vector<8x128xf32>
    %7 = arith.maximumf %5, %6 : vector<8x128xf32>
    %8 = arith.truncf %7 : vector<8x128xf32> to vector<8x128xbf16>
    %c0_6 = arith.constant 0 : index
    %c0_7 = arith.constant 0 : index
    %9 = vector.load %arg4[%c0_6, %c0_7] : memref<128x128xbf16, #tpu.memory_space<vmem>>, vector<128x128xbf16>
    %cst_8 = arith.constant dense<0.000000e+00> : vector<8x128xf32>
    %10 = tpu.matmul %8, %9, %cst_8 {dimension_numbers = #tpu.dot_dimension_numbers<[1], [0], [0], [1], [0, 0, 1, 1], [], []>} : vector<8x128xbf16>, vector<128x128xbf16>, vector<8x128xf32> -> vector<8x128xf32>
    %c0_9 = arith.constant 0 : index
    %c0_10 = arith.constant 0 : index
    %11 = vector.load %arg5[%c0_9, %c0_10] : memref<1x128xf32, #tpu.memory_space<vmem>>, vector<1x128xf32>
    %12 = vector.broadcast %11 : vector<1x128xf32> to vector<8x128xf32>
    %13 = arith.addf %10, %12 : vector<8x128xf32>
    %cst_11 = arith.constant 0.000000e+00 : f32
    %14 = vector.broadcast %cst_11 : f32 to vector<8x128xf32>
    %15 = arith.maximumf %13, %14 : vector<8x128xf32>
    %16 = arith.truncf %15 : vector<8x128xf32> to vector<8x128xbf16>
    %c0_12 = arith.constant 0 : index
    %c0_13 = arith.constant 0 : index
    %17 = vector.load %arg6[%c0_12, %c0_13] : memref<128x256xbf16, #tpu.memory_space<vmem>>, vector<128x256xbf16>
    %cst_14 = arith.constant dense<0.000000e+00> : vector<8x256xf32>
    %18 = tpu.matmul %16, %17, %cst_14 {dimension_numbers = #tpu.dot_dimension_numbers<[1], [0], [0], [1], [0, 0, 1, 1], [], []>} : vector<8x128xbf16>, vector<128x256xbf16>, vector<8x256xf32> -> vector<8x256xf32>
    %c0_15 = arith.constant 0 : index
    %c0_16 = arith.constant 0 : index
    %19 = vector.load %arg7[%c0_15, %c0_16] : memref<1x256xf32, #tpu.memory_space<vmem>>, vector<1x256xf32>
    %20 = vector.broadcast %19 : vector<1x256xf32> to vector<8x256xf32>
    %21 = arith.addf %18, %20 : vector<8x256xf32>
    %cst_17 = arith.constant 0.000000e+00 : f32
    %22 = vector.broadcast %cst_17 : f32 to vector<8x256xf32>
    %23 = arith.maximumf %21, %22 : vector<8x256xf32>
    %24 = vector.extract_strided_slice %23 {offsets = [0, 0], sizes = [8, 128], strides = [1, 1]} : vector<8x256xf32> to vector<8x128xf32>
    %25 = vector.extract_strided_slice %23 {offsets = [0, 128], sizes = [8, 128], strides = [1, 1]} : vector<8x256xf32> to vector<8x128xf32>
    %c0_18 = arith.constant 0 : index
    %c0_19 = arith.constant 0 : index
    %26 = vector.load %arg8[%c0_18, %c0_19] : memref<1x128xf32, #tpu.memory_space<vmem>>, vector<1x128xf32>
    %27 = vector.broadcast %26 : vector<1x128xf32> to vector<8x128xf32>
    %28 = arith.mulf %24, %27 : vector<8x128xf32>
    %cst_20 = arith.constant dense<0.000000e+00> : vector<8xf32>
    %29 = vector.multi_reduction <add>, %28, %cst_20 [1] : vector<8x128xf32> to vector<8xf32>
    %30 = vector.shape_cast %29 : vector<8xf32> to vector<8x1xf32>
    %c0_21 = arith.constant 0 : index
    %c0_22 = arith.constant 0 : index
    %31 = vector.load %arg9[%c0_21, %c0_22] : memref<1x1xf32, #tpu.memory_space<vmem>>, vector<1x1xf32>
    %32 = vector.broadcast %31 : vector<1x1xf32> to vector<8x1xf32>
    %33 = arith.addf %30, %32 : vector<8x1xf32>
    %c0_23 = arith.constant 0 : index
    %c0_24 = arith.constant 0 : index
    %34 = vector.load %arg12[%c0_23, %c0_24] : memref<8x1xf32, #tpu.memory_space<vmem>>, vector<8x1xf32>
    tpu.vector_store %arg12[%c0_23, %c0_24], %33 {strides = array<i32>} : memref<8x1xf32, #tpu.memory_space<vmem>>, vector<8x1xf32>,
    %35 = arith.truncf %25 : vector<8x128xf32> to vector<8x128xbf16>
    %c0_25 = arith.constant 0 : index
    %c0_26 = arith.constant 0 : index
    %36 = vector.load %arg10[%c0_25, %c0_26] : memref<128x8xbf16, #tpu.memory_space<vmem>>, vector<128x8xbf16>
    %cst_27 = arith.constant dense<0.000000e+00> : vector<8x8xf32>
    %37 = tpu.matmul %35, %36, %cst_27 {dimension_numbers = #tpu.dot_dimension_numbers<[1], [0], [0], [1], [0, 0, 1, 1], [], []>} : vector<8x128xbf16>, vector<128x8xbf16>, vector<8x8xf32> -> vector<8x8xf32>
    %c0_28 = arith.constant 0 : index
    %c0_29 = arith.constant 0 : index
    %38 = vector.load %arg11[%c0_28, %c0_29] : memref<1x8xf32, #tpu.memory_space<vmem>>, vector<1x8xf32>
    %39 = vector.broadcast %38 : vector<1x8xf32> to vector<8x8xf32>
    %40 = arith.addf %37, %39 : vector<8x8xf32>
    %c0_30 = arith.constant 0 : index
    %c0_31 = arith.constant 0 : index
    %41 = vector.load %arg13[%c0_30, %c0_31] : memref<8x8xf32, #tpu.memory_space<vmem>>, vector<8x8xf32>
    tpu.vector_store %arg13[%c0_30, %c0_31], %40 {strides = array<i32>} : memref<8x8xf32, #tpu.memory_space<vmem>>, vector<8x8xf32>,
    return
  }
  func.func @transform_0(%arg0: i32) -> (i32, i32) {
    %c0_i32 = arith.constant 0 : i32
    %c0_i32_0 = arith.constant 0 : i32
    return %arg0, %c0_i32 : i32, i32
  }
  func.func @transform_1(%arg0: i32) -> (i32, i32) {
    %c0_i32 = arith.constant 0 : i32
    %c0_i32_0 = arith.constant 0 : i32
    %c0_i32_1 = arith.constant 0 : i32
    return %c0_i32, %c0_i32_0 : i32, i32
  }
  func.func @transform_2(%arg0: i32) -> (i32, i32) {
    %c0_i32 = arith.constant 0 : i32
    %c0_i32_0 = arith.constant 0 : i32
    %c0_i32_1 = arith.constant 0 : i32
    return %c0_i32, %c0_i32_0 : i32, i32
  }
  func.func @transform_3(%arg0: i32) -> (i32, i32) {
    %c0_i32 = arith.constant 0 : i32
    %c0_i32_0 = arith.constant 0 : i32
    %c0_i32_1 = arith.constant 0 : i32
    return %c0_i32, %c0_i32_0 : i32, i32
  }
  func.func @transform_4(%arg0: i32) -> (i32, i32) {
    %c0_i32 = arith.constant 0 : i32
    %c0_i32_0 = arith.constant 0 : i32
    %c0_i32_1 = arith.constant 0 : i32
    return %c0_i32, %c0_i32_0 : i32, i32
  }
  func.func @transform_5(%arg0: i32) -> (i32, i32) {
    %c0_i32 = arith.constant 0 : i32
    %c0_i32_0 = arith.constant 0 : i32
    %c0_i32_1 = arith.constant 0 : i32
    return %c0_i32, %c0_i32_0 : i32, i32
  }
  func.func @transform_6(%arg0: i32) -> (i32, i32) {
    %c0_i32 = arith.constant 0 : i32
    %c0_i32_0 = arith.constant 0 : i32
    %c0_i32_1 = arith.constant 0 : i32
    return %c0_i32, %c0_i32_0 : i32, i32
  }
  func.func @transform_7(%arg0: i32) -> (i32, i32) {
    %c0_i32 = arith.constant 0 : i32
    %c0_i32_0 = arith.constant 0 : i32
    %c0_i32_1 = arith.constant 0 : i32
    return %c0_i32, %c0_i32_0 : i32, i32
  }
  func.func @transform_8(%arg0: i32) -> (i32, i32) {
    %c0_i32 = arith.constant 0 : i32
    %c0_i32_0 = arith.constant 0 : i32
    %c0_i32_1 = arith.constant 0 : i32
    return %c0_i32, %c0_i32_0 : i32, i32
  }
  func.func @transform_9(%arg0: i32) -> (i32, i32) {
    %c0_i32 = arith.constant 0 : i32
    %c0_i32_0 = arith.constant 0 : i32
    %c0_i32_1 = arith.constant 0 : i32
    return %c0_i32, %c0_i32_0 : i32, i32
  }
  func.func @transform_10(%arg0: i32) -> (i32, i32) {
    %c0_i32 = arith.constant 0 : i32
    %c0_i32_0 = arith.constant 0 : i32
    %c0_i32_1 = arith.constant 0 : i32
    return %c0_i32, %c0_i32_0 : i32, i32
  }
  func.func @transform_11(%arg0: i32) -> (i32, i32) {
    %c0_i32 = arith.constant 0 : i32
    %c0_i32_0 = arith.constant 0 : i32
    return %arg0, %c0_i32 : i32, i32
  }
  func.func @transform_12(%arg0: i32) -> (i32, i32) {
    %c0_i32 = arith.constant 0 : i32
    %c0_i32_0 = arith.constant 0 : i32
    return %arg0, %c0_i32 : i32, i32
  }
}

</mosaic_0001>

<llo_original>
// kernel: tpu_custom_call.1
$region0: #{tpu_custom_call.1}
  #allocation0 [shape = 'u32[]', space=smem, size = 0x4, offset = 0x4, fixed_abs, tag = 'smem constant byte address 0x4 - core index']
  #allocation1 [shape = 'u32[144,128]{1,0:T(1,128)}', space=vmem, size = 0x12000, scoped, tag = 'internal scratch']
  #allocation2 [shape = 'f32[1,1]{1,0:T(1,128)S(1)}', space=vmem, size = 0x200, scoped, tag = 'scoped memory for tpu_custom_call.1']
  %s0 = inlined_call_operand.vmem [shape: f32[8,16], index: 0, kind: input, shape index: {}]
  %s1 = inlined_call_operand.hbm [shape: f32[16,128], index: 1, kind: input, shape index: {}]
  %s2 = inlined_call_operand.vmem [shape: f32[1,128], index: 2, kind: input, shape index: {}]
  %s3 = inlined_call_operand.vmem [shape: bf16[128,128], index: 3, kind: input, shape index: {}]
  %s4 = inlined_call_operand.hbm [shape: f32[1,128], index: 4, kind: input, shape index: {}]
  %s5 = inlined_call_operand.hbm [shape: bf16[128,256], index: 5, kind: input, shape index: {}]
  %s6 = inlined_call_operand.vmem [shape: f32[1,256], index: 6, kind: input, shape index: {}]
  %s7 = inlined_call_operand.vmem [shape: f32[1,128], index: 7, kind: input, shape index: {}]
  %s8 = inlined_call_operand.<no memory space> [shape: f32[1,1], index: 8, kind: input, shape index: {}]
  %s9 = inlined_call_operand.vmem [shape: bf16[128,8], index: 9, kind: input, shape index: {}]
  %s10 = inlined_call_operand.vmem [shape: f32[1,8], index: 10, kind: input, shape index: {}]
  %s11 = inlined_call_operand.vmem [shape: f32[8,1], index: 11, kind: output, shape index: {0}]
  %s12 = inlined_call_operand.hbm [shape: f32[8,8], index: 12, kind: output, shape index: {1}]
  %13 = xla_tuple %s11, %s12
  %s14 = sld [smem:[#allocation0]]
  $region74: #{tpu_custom_call.1} parent=0
    _
  %s16 = ssub.s32 1, %s14
  %s17 = scalar_select 0, %s16, %s14
  %v18 = vstv %s8
  %19 = vst [vmem:[#allocation2] sm:$0x1] %v18
  $region1: #{tpu_custom_call.1} parent=0
    #allocation3 [shape = 'u8[8192]{0}', space=vmem, size = 0x2000, scoped, tag = 'input window, operand 1, single buffered']
    #allocation4 [shape = 's32[1]{0}', space=sflag, size = 0x4, scoped, tag = 'scoped memory for tpu_custom_call.1']
    #allocation5 [shape = 's32[1]{0}', space=sflag, size = 0x4, scoped, tag = 'scoped memory for tpu_custom_call.1']
    #allocation6 [shape = 'u8[512]{0}', space=vmem, size = 0x400, scoped, tag = 'input window, operand 4, single buffered']
    #allocation7 [shape = 's32[1]{0}', space=sflag, size = 0x4, scoped, tag = 'scoped memory for tpu_custom_call.1']
    #allocation8 [shape = 'u8[65536]{0}', space=vmem, size = 0x10000, scoped, tag = 'input window, operand 5, single buffered']
    #allocation9 [shape = 'u8[4096]{0}', space=vmem, size = 0x1000, scoped, tag = 'output window, operand 1, single buffered']
    %20 = vsyncpa [#allocation4], 0
    %21 = vsyncpa [#allocation7], 0
    %22 = vsyncpa [#allocation5], 0
    // Predicated region
    $region2: #{tpu_custom_call.1} parent=1 // pred_check
      _
    $region3: #{tpu_custom_call.1} parent=1 // pred_check_branch
      %24 = sbr.rel (0) target = $region5
    $region4: #{tpu_custom_call.1} parent=1 // pred_region
      _
    $region5: #{tpu_custom_call.1} parent=1 // pred_fallthru
      _
    // Predicated region
    $region6: #{tpu_custom_call.1} parent=1 // pred_check
      _
    $region7: #{tpu_custom_call.1} parent=1 // pred_check_branch
      %26 = sbr.rel (0) target = $region9
    $region8: #{tpu_custom_call.1} parent=1 // pred_region
      %s28 = ssub.s32 256, 256
      %29 = vsyncadd [#allocation4], %s28
      %s30 = sshll.u32 [#allocation3], 4
      %s31 = int_to_ptr.vmem [resolvable:$true] %s30
      %36 = dma.hbm_to_vmem [thread:$0]  %s1, 256, %s31, [#allocation4], 128, 128, 8
    $region9: #{tpu_custom_call.1} parent=1 // pred_fallthru
      _
    // Predicated region
    $region10: #{tpu_custom_call.1} parent=1 // pred_check
      _
    $region11: #{tpu_custom_call.1} parent=1 // pred_check_branch
      %38 = sbr.rel (0) target = $region13
    $region12: #{tpu_custom_call.1} parent=1 // pred_region
      _
    $region13: #{tpu_custom_call.1} parent=1 // pred_fallthru
      _
    // Predicated region
    $region14: #{tpu_custom_call.1} parent=1 // pred_check
      _
    $region15: #{tpu_custom_call.1} parent=1 // pred_check_branch
      %40 = sbr.rel (0) target = $region17
    $region16: #{tpu_custom_call.1} parent=1 // pred_region
      _
    $region17: #{tpu_custom_call.1} parent=1 // pred_fallthru
      _
    // Predicated region
    $region18: #{tpu_custom_call.1} parent=1 // pred_check
      _
    $region19: #{tpu_custom_call.1} parent=1 // pred_check_branch
      %42 = sbr.rel (0) target = $region21
    $region20: #{tpu_custom_call.1} parent=1 // pred_region
      %s44 = ssub.s32 16, 16
      %45 = vsyncadd [#allocation7], %s44
      %s47 = sshll.u32 [#allocation6], 4
      %s48 = int_to_ptr.vmem [resolvable:$true] %s47
      %50 = dma.hbm_to_vmem [thread:$0]  %s4, 16, %s48, [#allocation7]
    $region21: #{tpu_custom_call.1} parent=1 // pred_fallthru
      _
    // Predicated region
    $region22: #{tpu_custom_call.1} parent=1 // pred_check
      _
    $region23: #{tpu_custom_call.1} parent=1 // pred_check_branch
      %52 = sbr.rel (0) target = $region25
    $region24: #{tpu_custom_call.1} parent=1 // pred_region
      %s54 = ssub.s32 2048, 2048
      %55 = vsyncadd [#allocation7], %s54
      %s56 = sshll.u32 [#allocation8], 4
      %s57 = int_to_ptr.vmem [resolvable:$true] %s56
      %62 = dma.hbm_to_vmem [thread:$0]  %s5, 2048, %s57, [#allocation7], 128, 128, 8
    $region25: #{tpu_custom_call.1} parent=1 // pred_fallthru
      _
    // Predicated region
    $region26: #{tpu_custom_call.1} parent=1 // pred_check
      _
    $region27: #{tpu_custom_call.1} parent=1 // pred_check_branch
      %64 = sbr.rel (0) target = $region29
    $region28: #{tpu_custom_call.1} parent=1 // pred_region
      _
    $region29: #{tpu_custom_call.1} parent=1 // pred_fallthru
      _
    // Predicated region
    $region30: #{tpu_custom_call.1} parent=1 // pred_check
      _
    $region31: #{tpu_custom_call.1} parent=1 // pred_check_branch
      %66 = sbr.rel (0) target = $region33
    $region32: #{tpu_custom_call.1} parent=1 // pred_region
      _
    $region33: #{tpu_custom_call.1} parent=1 // pred_fallthru
      _
    // Predicated region
    $region34: #{tpu_custom_call.1} parent=1 // pred_check
      _
    $region35: #{tpu_custom_call.1} parent=1 // pred_check_branch
      %68 = sbr.rel (0) target = $region37
    $region36: #{tpu_custom_call.1} parent=1 // pred_region
      _
    $region37: #{tpu_custom_call.1} parent=1 // pred_fallthru
      _
    // Predicated region
    $region38: #{tpu_custom_call.1} parent=1 // pred_check
      _
    $region39: #{tpu_custom_call.1} parent=1 // pred_check_branch
      %70 = sbr.rel (0) target = $region41
    $region40: #{tpu_custom_call.1} parent=1 // pred_region
      _
    $region41: #{tpu_custom_call.1} parent=1 // pred_fallthru
      _
    // Predicated region
    $region42: #{tpu_custom_call.1} parent=1 // pred_check
      _
    $region43: #{tpu_custom_call.1} parent=1 // pred_check_branch
      %72 = sbr.rel (0) target = $region45
    $region44: #{tpu_custom_call.1} parent=1 // pred_region
      _
    $region45: #{tpu_custom_call.1} parent=1 // pred_fallthru
      _
    // Predicated region
    $region46: #{tpu_custom_call.1} parent=1 // pred_check
      _
    $region47: #{tpu_custom_call.1} parent=1 // pred_check_branch
      %74 = sbr.rel (0) target = $region49
    $region48: #{tpu_custom_call.1} parent=1 // pred_region
      %75 = dma.done [#allocation4], 256
    $region49: #{tpu_custom_call.1} parent=1 // pred_fallthru
      _
    // Predicated region
    $region50: #{tpu_custom_call.1} parent=1 // pred_check
      _
    $region51: #{tpu_custom_call.1} parent=1 // pred_check_branch
      %77 = sbr.rel (0) target = $region53
    $region52: #{tpu_custom_call.1} parent=1 // pred_region
      %78 = dma.done [#allocation7], 16
    $region53: #{tpu_custom_call.1} parent=1 // pred_fallthru
      _
    // Predicated region
    $region54: #{tpu_custom_call.1} parent=1 // pred_check
      _
    $region55: #{tpu_custom_call.1} parent=1 // pred_check_branch
      %80 = sbr.rel (0) target = $region57
    $region56: #{tpu_custom_call.1} parent=1 // pred_region
      %81 = dma.done [#allocation7], 2048
    $region57: #{tpu_custom_call.1} parent=1 // pred_fallthru
      _
    %v83 = vld [vmem:[%s0] sm:$0xff]
    %v84 = vld [vmem:[#allocation3] sm:$0xff]
    %v85 = vld [vmem:[#allocation3 + $0x8] sm:$0xff]
    %v86 = vld [vmem:[%s2] sm:$0x1]
    %v88 = vlaneseq
    %v89 = vshrl.u32 %v88, 7
    %v90 = vsub.s32 0, %v89
    %v91 = vrot.slane %v86, %v90
    %vm93 = vcmask 130048
    %v95 = vsel %vm93, %v83, 0
    %97 = vmatprep.subr.mxu0 0.0
    %98 = vmatpush1.msra.mxu0 0.0
    %99 = vmatprep.subr.mxu0 0.0
    %100 = vmatpush1.msra.mxu0 0.0
    %101 = vmatprep.subr.mxu0 0.0
    %102 = vmatpush1.msra.mxu0 0.0
    %103 = vmatprep.subr.mxu0 0.0
    %104 = vmatpush1.msra.mxu0 0.0
    %105 = vmatprep.subr.mxu0 0.0
    %106 = vmatpush1.msra.mxu0 0.0
    %107 = vmatprep.subr.mxu0 0.0
    %108 = vmatpush1.msra.mxu0 0.0
    %109 = vmatprep.subr.mxu0 0.0
    %110 = vmatpush1.msra.mxu0 0.0
    %111 = vmatprep.subr.mxu0 0.0
    %112 = vmatpush1.msra.mxu0 0.0
    %113 = vmatprep.subr.mxu0 0.0
    %114 = vmatpush1.msra.mxu0 0.0
    %115 = vmatprep.subr.mxu0 0.0
    %116 = vmatpush1.msra.mxu0 0.0
    %117 = vmatprep.subr.mxu0 0.0
    %118 = vmatpush1.msra.mxu0 0.0
    %119 = vmatprep.subr.mxu0 0.0
    %120 = vmatpush1.msra.mxu0 0.0
    %121 = vmatprep.subr.mxu0 0.0
    %122 = vmatpush1.msra.mxu0 0.0
    %123 = vmatprep.subr.mxu0 0.0
    %124 = vmatpush1.msra.mxu0 0.0
    %125 = vmatprep.subr.mxu0 0.0
    %126 = vmatpush1.msra.mxu0 %v85
    %127 = vmatprep.subr.mxu0 0.0
    %128 = vmatpush1.msra.mxu0 %v84
    %129 = vmatprep.subr.mxu0 0.0
    %130 = vmatpush2.msra.mxu0 0.0
    %131 = vmatprep.subr.mxu0 0.0
    %132 = vmatpush2.msra.mxu0 0.0
    %133 = vmatprep.subr.mxu0 0.0
    %134 = vmatpush2.msra.mxu0 0.0
    %135 = vmatprep.subr.mxu0 0.0
    %136 = vmatpush2.msra.mxu0 0.0
    %137 = vmatprep.subr.mxu0 0.0
    %138 = vmatpush2.msra.mxu0 0.0
    %139 = vmatprep.subr.mxu0 0.0
    %140 = vmatpush2.msra.mxu0 0.0
    %141 = vmatprep.subr.mxu0 0.0
    %142 = vmatpush2.msra.mxu0 0.0
    %143 = vmatprep.subr.mxu0 0.0
    %144 = vmatpush2.msra.mxu0 0.0
    %145 = vmatprep.subr.mxu0 0.0
    %146 = vmatpush2.msra.mxu0 0.0
    %147 = vmatprep.subr.mxu0 0.0
    %148 = vmatpush2.msra.mxu0 0.0
    %149 = vmatprep.subr.mxu0 0.0
    %150 = vmatpush2.msra.mxu0 0.0
    %151 = vmatprep.subr.mxu0 0.0
    %152 = vmatpush2.msra.mxu0 0.0
    %153 = vmatprep.subr.mxu0 0.0
    %154 = vmatpush2.msra.mxu0 0.0
    %155 = vmatprep.subr.mxu0 0.0
    %156 = vmatpush2.msra.mxu0 0.0
    %157 = vmatprep.subr.mxu0 0.0
    %158 = vmatpush2.msra.mxu0 0.0
    %159 = vmatprep.subr.mxu0 0.0
    %160 = vmatpush2.msra.mxu0 0.0
    %161 = vmatprep.mubr.f32.mxu0 0.0
    %162 = vmatmul.mubr.f32.gmra.mxu0 %v95
    %v163 = vpop.f32.mrf.mxu0
    %v164 = vadd.f32 %v91, %v163
    %v165 = vpop.f32.mrf.mxu0
    %166 = vdwg.mxu0
    %v167 = vmax.f32 %v164, 0.0
    %v168 = vpack.c.bf16 %v167, %v167
    %v169 = vld [vmem:[%s3] sm:$0xf]
    %v170 = vld [vmem:[%s3 + $0x4] sm:$0xf]
    %v171 = vld [vmem:[%s3 + $0x8] sm:$0xf]
    %v172 = vld [vmem:[%s3 + $0xc] sm:$0xf]
    %v173 = vld [vmem:[%s3 + $0x10] sm:$0xf]
    %v174 = vld [vmem:[%s3 + $0x14] sm:$0xf]
    %v175 = vld [vmem:[%s3 + $0x18] sm:$0xf]
    %v176 = vld [vmem:[%s3 + $0x1c] sm:$0xf]
    %v177 = vld [vmem:[%s3 + $0x20] sm:$0xf]
    %v178 = vld [vmem:[%s3 + $0x24] sm:$0xf]
    %v179 = vld [vmem:[%s3 + $0x28] sm:$0xf]
    %v180 = vld [vmem:[%s3 + $0x2c] sm:$0xf]
    %v181 = vld [vmem:[%s3 + $0x30] sm:$0xf]
    %v182 = vld [vmem:[%s3 + $0x34] sm:$0xf]
    %v183 = vld [vmem:[%s3 + $0x38] sm:$0xf]
    %v184 = vld [vmem:[%s3 + $0x3c] sm:$0xf]
    %v185 = vld [vmem:[#allocation6] sm:$0x1]
    %v187 = vlaneseq
    %v188 = vshrl.u32 %v187, 7
    %v189 = vsub.s32 0, %v188
    %v190 = vrot.slane %v185, %v189
    %v208 = vunpack.c.l.b16 %v169
    %v209 = vunpack.c.l.b16 %v170
    %v210 = vunpack.c.l.b16 %v171
    %v211 = vunpack.c.l.b16 %v172
    %v212 = vunpack.c.l.b16 %v173
    %v213 = vunpack.c.l.b16 %v174
    %v214 = vunpack.c.l.b16 %v175
    %v215 = vunpack.c.l.b16 %v176
    %v216 = vunpack.c.l.b16 %v177
    %v217 = vunpack.c.l.b16 %v178
    %v218 = vunpack.c.l.b16 %v179
    %v219 = vunpack.c.l.b16 %v180
    %v220 = vunpack.c.l.b16 %v181
    %v221 = vunpack.c.l.b16 %v182
    %v222 = vunpack.c.l.b16 %v183
    %v223 = vunpack.c.l.b16 %v184
    %v224 = vpack.c.b16 %v209, %v208
    %v225 = vpack.c.b16 %v211, %v210
    %v226 = vpack.c.b16 %v213, %v212
    %v227 = vpack.c.b16 %v215, %v214
    %v228 = vpack.c.b16 %v217, %v216
    %v229 = vpack.c.b16 %v219, %v218
    %v230 = vpack.c.b16 %v221, %v220
    %v231 = vpack.c.b16 %v223, %v222
    %240 = vmatprep.subr.bf16.mxu0 0
    %241 = vmatpush1.bf16.msra.mxu0 %v231
    %242 = vmatprep.subr.bf16.mxu0 0
    %243 = vmatpush1.bf16.msra.mxu0 %v230
    %244 = vmatprep.subr.bf16.mxu0 0
    %245 = vmatpush1.bf16.msra.mxu0 %v229
    %246 = vmatprep.subr.bf16.mxu0 0
    %247 = vmatpush1.bf16.msra.mxu0 %v228
    %248 = vmatprep.subr.bf16.mxu0 0
    %249 = vmatpush1.bf16.msra.mxu0 %v227
    %250 = vmatprep.subr.bf16.mxu0 0
    %251 = vmatpush1.bf16.msra.mxu0 %v226
    %252 = vmatprep.subr.bf16.mxu0 0
    %253 = vmatpush1.bf16.msra.mxu0 %v225
    %254 = vmatprep.subr.bf16.mxu0 0
    %255 = vmatpush1.bf16.msra.mxu0 %v224
    %256 = vmatprep.subr.bf16.mxu0 0
    %257 = vmatpush2.bf16.msra.mxu0 0
    %258 = vmatprep.subr.bf16.mxu0 0
    %259 = vmatpush2.bf16.msra.mxu0 0
    %260 = vmatprep.subr.bf16.mxu0 0
    %261 = vmatpush2.bf16.msra.mxu0 0
    %262 = vmatprep.subr.bf16.mxu0 0
    %263 = vmatpush2.bf16.msra.mxu0 0
    %264 = vmatprep.subr.bf16.mxu0 0
    %265 = vmatpush2.bf16.msra.mxu0 0
    %266 = vmatprep.subr.bf16.mxu0 0
    %267 = vmatpush2.bf16.msra.mxu0 0
    %268 = vmatprep.subr.bf16.mxu0 0
    %269 = vmatpush2.bf16.msra.mxu0 0
    %270 = vmatprep.subr.bf16.mxu0 0
    %271 = vmatpush2.bf16.msra.mxu0 0
    %272 = vmatprep.mubr.bf16.mxu0 0
    %273 = vmatmul.mubr.bf16.gmra.mxu0 %v168
    %v274 = vpop.f32.mrf.mxu0
    %v275 = vadd.f32 %v190, %v274
    %v276 = vpop.f32.mrf.mxu0
    %v277 = vpop.f32.mrf.mxu0
    %v278 = vpop.f32.mrf.mxu0
    %279 = vdwg.mxu0
    %v280 = vmax.f32 %v275, 0.0
    %v281 = vpack.c.bf16 %v280, %v280
    %v282 = vld [vmem:[#allocation8] sm:$0xff]
    %v283 = vld [vmem:[#allocation8 + $0x8] sm:$0xff]
    %v284 = vld [vmem:[#allocation8 + $0x10] sm:$0xff]
    %v285 = vld [vmem:[#allocation8 + $0x18] sm:$0xff]
    %v286 = vld [vmem:[#allocation8 + $0x20] sm:$0xff]
    %v287 = vld [vmem:[#allocation8 + $0x28] sm:$0xff]
    %v288 = vld [vmem:[#allocation8 + $0x30] sm:$0xff]
    %v289 = vld [vmem:[#allocation8 + $0x38] sm:$0xff]
    %v290 = vld [vmem:[#allocation8 + $0x40] sm:$0xff]
    %v291 = vld [vmem:[#allocation8 + $0x48] sm:$0xff]
    %v292 = vld [vmem:[#allocation8 + $0x50] sm:$0xff]
    %v293 = vld [vmem:[#allocation8 + $0x58] sm:$0xff]
    %v294 = vld [vmem:[#allocation8 + $0x60] sm:$0xff]
    %v295 = vld [vmem:[#allocation8 + $0x68] sm:$0xff]
    %v296 = vld [vmem:[#allocation8 + $0x70] sm:$0xff]
    %v297 = vld [vmem:[#allocation8 + $0x78] sm:$0xff]
    %v298 = vld [vmem:[%s6] sm:$0x3]
    %v300 = vlaneseq
    %v301 = vshrl.u32 %v300, 7
    %v302 = vsub.s32 0, %v301
    %v303 = vrot.slane %v298, %v302
    %v304 = vlaneseq
    %v305 = vshrl.u32 %v304, 7
    %v306 = vsub.s32 1, %v305
    %v307 = vrot.slane %v298, %v306
    %v326 = vunpack.c.l.b16 %v282
    %v327 = vunpack.c.h.b16 %v282
    %v328 = vunpack.c.l.b16 %v283
    %v329 = vunpack.c.h.b16 %v283
    %v330 = vunpack.c.l.b16 %v284
    %v331 = vunpack.c.h.b16 %v284
    %v332 = vunpack.c.l.b16 %v285
    %v333 = vunpack.c.h.b16 %v285
    %v334 = vunpack.c.l.b16 %v286
    %v335 = vunpack.c.h.b16 %v286
    %v336 = vunpack.c.l.b16 %v287
    %v337 = vunpack.c.h.b16 %v287
    %v338 = vunpack.c.l.b16 %v288
    %v339 = vunpack.c.h.b16 %v288
    %v340 = vunpack.c.l.b16 %v289
    %v341 = vunpack.c.h.b16 %v289
    %v342 = vunpack.c.l.b16 %v290
    %v343 = vunpack.c.h.b16 %v290
    %v344 = vunpack.c.l.b16 %v291
    %v345 = vunpack.c.h.b16 %v291
    %v346 = vunpack.c.l.b16 %v292
    %v347 = vunpack.c.h.b16 %v292
    %v348 = vunpack.c.l.b16 %v293
    %v349 = vunpack.c.h.b16 %v293
    %v350 = vunpack.c.l.b16 %v294
    %v351 = vunpack.c.h.b16 %v294
    %v352 = vunpack.c.l.b16 %v295
    %v353 = vunpack.c.h.b16 %v295
    %v354 = vunpack.c.l.b16 %v296
    %v355 = vunpack.c.h.b16 %v296
    %v356 = vunpack.c.l.b16 %v297
    %v357 = vunpack.c.h.b16 %v297
    %v358 = vpack.c.b16 %v328, %v326
    %v359 = vpack.c.b16 %v329, %v327
    %v360 = vpack.c.b16 %v332, %v330
    %v361 = vpack.c.b16 %v333, %v331
    %v362 = vpack.c.b16 %v336, %v334
    %v363 = vpack.c.b16 %v337, %v335
    %v364 = vpack.c.b16 %v340, %v338
    %v365 = vpack.c.b16 %v341, %v339
    %v366 = vpack.c.b16 %v344, %v342
    %v367 = vpack.c.b16 %v345, %v343
    %v368 = vpack.c.b16 %v348, %v346
    %v369 = vpack.c.b16 %v349, %v347
    %v370 = vpack.c.b16 %v352, %v350
    %v371 = vpack.c.b16 %v353, %v351
    %v372 = vpack.c.b16 %v356, %v354
    %v373 = vpack.c.b16 %v357, %v355
    %390 = vmatprep.subr.bf16.mxu0 %v373
    %391 = vmatpush1.bf16.msra.mxu0 %v372
    %392 = vmatprep.subr.bf16.mxu0 %v371
    %393 = vmatpush1.bf16.msra.mxu0 %v370
    %394 = vmatprep.subr.bf16.mxu0 %v369
    %395 = vmatpush1.bf16.msra.mxu0 %v368
    %396 = vmatprep.subr.bf16.mxu0 %v367
    %397 = vmatpush1.bf16.msra.mxu0 %v366
    %398 = vmatprep.subr.bf16.mxu0 %v365
    %399 = vmatpush1.bf16.msra.mxu0 %v364
    %400 = vmatprep.subr.bf16.mxu0 %v363
    %401 = vmatpush1.bf16.msra.mxu0 %v362
    %402 = vmatprep.subr.bf16.mxu0 %v361
    %403 = vmatpush1.bf16.msra.mxu0 %v360
    %404 = vmatprep.subr.bf16.mxu0 %v359
    %405 = vmatpush1.bf16.msra.mxu0 %v358
    %406 = vmatprep.subr.bf16.mxu0 0
    %407 = vmatpush2.bf16.msra.mxu0 0
    %408 = vmatprep.subr.bf16.mxu0 0
    %409 = vmatpush2.bf16.msra.mxu0 0
    %410 = vmatprep.subr.bf16.mxu0 0
    %411 = vmatpush2.bf16.msra.mxu0 0
    %412 = vmatprep.subr.bf16.mxu0 0
    %413 = vmatpush2.bf16.msra.mxu0 0
    %414 = vmatprep.subr.bf16.mxu0 0
    %415 = vmatpush2.bf16.msra.mxu0 0
    %416 = vmatprep.subr.bf16.mxu0 0
    %417 = vmatpush2.bf16.msra.mxu0 0
    %418 = vmatprep.subr.bf16.mxu0 0
    %419 = vmatpush2.bf16.msra.mxu0 0
    %420 = vmatprep.subr.bf16.mxu0 0
    %421 = vmatpush2.bf16.msra.mxu0 0
    %422 = vmatprep.mubr.bf16.mxu0 0
    %423 = vmatmul.mubr.bf16.gmra.mxu0 %v281
    %v424 = vpop.f32.mrf.mxu0
    %v425 = vadd.f32 %v303, %v424
    %v426 = vpop.f32.mrf.mxu0
    %v427 = vadd.f32 %v307, %v426
    %v428 = vpop.f32.mrf.mxu0
    %v429 = vpop.f32.mrf.mxu0
    %430 = vdwg.mxu0
    %v431 = vmax.f32 %v425, 0.0
    %v432 = vmax.f32 %v427, 0.0
    %v433 = vld [vmem:[%s7] sm:$0x1]
    %v435 = vlaneseq
    %v436 = vshrl.u32 %v435, 7
    %v437 = vsub.s32 0, %v436
    %v438 = vrot.slane %v433, %v437
    %v440 = vmul.f32 %v431, %v438
    %441 = vadd.xlane.f32.xlu0 %v440
    %v442 = vpop.xlane.xlu0 %441
    %v443 = vld [vmem:[#allocation2] sm:$0x1]
    %v445 = vlaneseq
    %v446 = vshrl.u32 %v445, 7
    %v447 = vsub.s32 0, %v446
    %v448 = vrot.slane %v443, %v447
    %v450 = vadd.f32 %v442, %v448
    %vm451 = vcmask 7168
    %452 = vst.msk [vmem:[%s11] sm:$0xff] %vm451, %v450
    %v453 = vpack.c.bf16 %v432, %v432
    %v454 = vld [vmem:[%s9] sm:$0xf]
    %v455 = vld [vmem:[%s9 + $0x4] sm:$0xf]
    %v456 = vld [vmem:[%s9 + $0x8] sm:$0xf]
    %v457 = vld [vmem:[%s9 + $0xc] sm:$0xf]
    %v458 = vld [vmem:[%s9 + $0x10] sm:$0xf]
    %v459 = vld [vmem:[%s9 + $0x14] sm:$0xf]
    %v460 = vld [vmem:[%s9 + $0x18] sm:$0xf]
    %v461 = vld [vmem:[%s9 + $0x1c] sm:$0xf]
    %v462 = vld [vmem:[%s9 + $0x20] sm:$0xf]
    %v463 = vld [vmem:[%s9 + $0x24] sm:$0xf]
    %v464 = vld [vmem:[%s9 + $0x28] sm:$0xf]
    %v465 = vld [vmem:[%s9 + $0x2c] sm:$0xf]
    %v466 = vld [vmem:[%s9 + $0x30] sm:$0xf]
    %v467 = vld [vmem:[%s9 + $0x34] sm:$0xf]
    %v468 = vld [vmem:[%s9 + $0x38] sm:$0xf]
    %v469 = vld [vmem:[%s9 + $0x3c] sm:$0xf]
    %v470 = vld [vmem:[%s10] sm:$0x1]
    %v472 = vlaneseq
    %v473 = vshrl.u32 %v472, 7
    %v474 = vsub.s32 0, %v473
    %v475 = vrot.slane %v470, %v474
    %v493 = vunpack.c.l.b16 %v454
    %v494 = vunpack.c.l.b16 %v455
    %v495 = vunpack.c.l.b16 %v456
    %v496 = vunpack.c.l.b16 %v457
    %v497 = vunpack.c.l.b16 %v458
    %v498 = vunpack.c.l.b16 %v459
    %v499 = vunpack.c.l.b16 %v460
    %v500 = vunpack.c.l.b16 %v461
    %v501 = vunpack.c.l.b16 %v462
    %v502 = vunpack.c.l.b16 %v463
    %v503 = vunpack.c.l.b16 %v464
    %v504 = vunpack.c.l.b16 %v465
    %v505 = vunpack.c.l.b16 %v466
    %v506 = vunpack.c.l.b16 %v467
    %v507 = vunpack.c.l.b16 %v468
    %v508 = vunpack.c.l.b16 %v469
    %v509 = vpack.c.b16 %v494, %v493
    %v510 = vpack.c.b16 %v496, %v495
    %v511 = vpack.c.b16 %v498, %v497
    %v512 = vpack.c.b16 %v500, %v499
    %v513 = vpack.c.b16 %v502, %v501
    %v514 = vpack.c.b16 %v504, %v503
    %v515 = vpack.c.b16 %v506, %v505
    %v516 = vpack.c.b16 %v508, %v507
    %525 = vmatprep.subr.bf16.mxu0 0
    %526 = vmatpush1.bf16.msra.mxu0 %v516
    %527 = vmatprep.subr.bf16.mxu0 0
    %528 = vmatpush1.bf16.msra.mxu0 %v515
    %529 = vmatprep.subr.bf16.mxu0 0
    %530 = vmatpush1.bf16.msra.mxu0 %v514
    %531 = vmatprep.subr.bf16.mxu0 0
    %532 = vmatpush1.bf16.msra.mxu0 %v513
    %533 = vmatprep.subr.bf16.mxu0 0
    %534 = vmatpush1.bf16.msra.mxu0 %v512
    %535 = vmatprep.subr.bf16.mxu0 0
    %536 = vmatpush1.bf16.msra.mxu0 %v511
    %537 = vmatprep.subr.bf16.mxu0 0
    %538 = vmatpush1.bf16.msra.mxu0 %v510
    %539 = vmatprep.subr.bf16.mxu0 0
    %540 = vmatpush1.bf16.msra.mxu0 %v509
    %541 = vmatprep.subr.bf16.mxu0 0
    %542 = vmatpush2.bf16.msra.mxu0 0
    %543 = vmatprep.subr.bf16.mxu0 0
    %544 = vmatpush2.bf16.msra.mxu0 0
    %545 = vmatprep.subr.bf16.mxu0 0
    %546 = vmatpush2.bf16.msra.mxu0 0
    %547 = vmatprep.subr.bf16.mxu0 0
    %548 = vmatpush2.bf16.msra.mxu0 0
    %549 = vmatprep.subr.bf16.mxu0 0
    %550 = vmatpush2.bf16.msra.mxu0 0
    %551 = vmatprep.subr.bf16.mxu0 0
    %552 = vmatpush2.bf16.msra.mxu0 0
    %553 = vmatprep.subr.bf16.mxu0 0
    %554 = vmatpush2.bf16.msra.mxu0 0
    %555 = vmatprep.subr.bf16.mxu0 0
    %556 = vmatpush2.bf16.msra.mxu0 0
    %557 = vmatprep.mubr.bf16.mxu0 0
    %558 = vmatmul.mubr.bf16.gmra.mxu0 %v453
    %v559 = vpop.f32.mrf.mxu0
    %v560 = vadd.f32 %v475, %v559
    %v561 = vpop.f32.mrf.mxu0
    %v562 = vpop.f32.mrf.mxu0
    %v563 = vpop.f32.mrf.mxu0
    %564 = vdwg.mxu0
    %vm565 = vcmask 64512
    %566 = vst.msk [vmem:[#allocation9] sm:$0xff] %vm565, %v560
    // Predicated region
    $region58: #{tpu_custom_call.1} parent=1 // pred_check
      _
    $region59: #{tpu_custom_call.1} parent=1 // pred_check_branch
      %568 = sbr.rel (0) target = $region61
    $region60: #{tpu_custom_call.1} parent=1 // pred_region
      _
    $region61: #{tpu_custom_call.1} parent=1 // pred_fallthru
      _
    // Predicated region
    $region62: #{tpu_custom_call.1} parent=1 // pred_check
      _
    $region63: #{tpu_custom_call.1} parent=1 // pred_check_branch
      %570 = sbr.rel (0) target = $region65
    $region64: #{tpu_custom_call.1} parent=1 // pred_region
      %s572 = ssub.s32 128, 128
      %573 = vsyncadd [#allocation5], %s572
      %s575 = sshll.u32 [#allocation9], 4
      %s576 = int_to_ptr.vmem [resolvable:$true] %s575
      %578 = dma.vmem_to_hbm [thread:$0]  %s576, 128, %s12, [#allocation5]
    $region65: #{tpu_custom_call.1} parent=1 // pred_fallthru
      _
    // Predicated region
    $region66: #{tpu_custom_call.1} parent=1 // pred_check
      _
    $region67: #{tpu_custom_call.1} parent=1 // pred_check_branch
      %580 = sbr.rel (0) target = $region69
    $region68: #{tpu_custom_call.1} parent=1 // pred_region
      _
    $region69: #{tpu_custom_call.1} parent=1 // pred_fallthru
      _
    // Predicated region
    $region70: #{tpu_custom_call.1} parent=1 // pred_check
      _
    $region71: #{tpu_custom_call.1} parent=1 // pred_check_branch
      %582 = sbr.rel (0) target = $region73
    $region72: #{tpu_custom_call.1} parent=1 // pred_region
      %583 = dma.done [#allocation5], 128
    $region73: #{tpu_custom_call.1} parent=1 // pred_fallthru
      _
    %584 = vsyncpa [#allocation4], 1
    %585 = vsyncpa [#allocation7], 1
    %586 = vsyncpa [#allocation5], 1

</llo_original>
